<compile_context>
chip_gen: v7x
topology: tpu7x:2x2x1
jax: 0.10.0
libtpu: 0.0.40
codegen_flags: <defaults>
</compile_context>

<pallas_src>
import jax
import jax.numpy as jnp
from jax.experimental import pallas as pl
from jax.experimental.pallas import tpu as pltpu

EPS = 1e-5
_NC = 2                      # stats-pass parallel slots (v7x dual TensorCore)
_MIB = 1024 * 1024
_VMEM_LIMIT_CACHE = None


def _pad128(n):
    return ((n + 127) // 128) * 128


def _vmem_limit():
    """Scoped-VMEM budget ~= 3/4 of physical VMEM (96 MiB v5e/v6e, 48 MiB v7x)."""
    global _VMEM_LIMIT_CACHE
    if _VMEM_LIMIT_CACHE is None:
        try:
            phys = int(pltpu.get_tpu_info().vmem_capacity_bytes)
        except Exception:                      # conservative fallback (v7x-sized)
            phys = 64 * _MIB
        _VMEM_LIMIT_CACHE = int(min(max((3 * phys) // 4, 32 * _MIB), 100 * _MIB))
    return _VMEM_LIMIT_CACHE


# ---------------------------------------------------------------------------
# Fused single-block kernel (small / mid batches: everything resident in VMEM).
# ---------------------------------------------------------------------------
def _fused_kernel(x_ref, w1_ref, g1_ref, be1_ref, w2_ref, g2_ref, be2_ref,
                  w3_ref, b3_ref, o_ref):
    x = x_ref[...]
    inv_b = 1.0 / x.shape[0]

    def bn_relu(h, gamma, beta):
        # Training-mode BatchNorm1d (biased variance, eps=1e-5).  Centered
        # variance: data is VMEM-resident, so the extra subtract is free and
        # avoids E[h^2]-mean^2 cancellation.
        mean = jnp.sum(h, axis=0, keepdims=True) * inv_b
        d = h - mean
        var = jnp.sum(d * d, axis=0, keepdims=True) * inv_b
        scale = gamma * jax.lax.rsqrt(var + EPS)
        return jnp.maximum(d * scale + beta, 0.0)

    # fc1/fc2 biases intentionally omitted (cancelled exactly by BN mean-sub).
    h = jnp.dot(x, w1_ref[...], preferred_element_type=jnp.float32)
    h = bn_relu(h, g1_ref[...], be1_ref[...])
    h = jnp.dot(h, w2_ref[...], preferred_element_type=jnp.float32)
    h = bn_relu(h, g2_ref[...], be2_ref[...])
    o_ref[...] = (jnp.dot(h, w3_ref[...], preferred_element_type=jnp.float32)
                  + b3_ref[...]).astype(o_ref.dtype)


def _fused_forward(x, p, vmem_limit):
    B, F = x.shape
    H1, H2, O = p["w1"].shape[1], p["w2"].shape[1], p["w3"].shape[1]
    args = (x, p["w1"], p["g1"], p["be1"], p["w2"], p["g2"], p["be2"],
            p["w3"], p["b3"])
    cost = pl.CostEstimate(
        flops=2 * B * (F * H1 + H1 * H2 + H2 * O),
        transcendentals=H1 + H2,
        bytes_accessed=4 * (sum(int(a.size) for a in args) + B * O),
    )
    return pl.pallas_call(
        _fused_kernel,
        out_shape=jax.ShapeDtypeStruct((B, O), jnp.float32),
        in_specs=[pl.BlockSpec(memory_space=pltpu.VMEM) for _ in args],
        out_specs=pl.BlockSpec(memory_space=pltpu.VMEM),
        compiler_params=pltpu.CompilerParams(vmem_limit_bytes=vmem_limit),
        cost_estimate=cost,
    )(*args)


# ---------------------------------------------------------------------------
# Batch-tiled three-pass path (large batches, full-batch BN statistics).
# ---------------------------------------------------------------------------
def _stats1_kernel(x_ref, w1_ref, xsum_ref, sq_ref):
    # Per-core partial accumulators: sum(x) (F-wide) and sumsq(h1) (H1-wide).
    # Linearity: sum_batch(x @ W1) == sum_batch(x) @ W1 (no fc1 bias), so the
    # mean of h1 is reconstructed in the wrapper with one tiny matmul.
    @pl.when(pl.program_id(1) == 0)
    def _():
        xsum_ref[...] = jnp.zeros_like(xsum_ref)
        sq_ref[...] = jnp.zeros_like(sq_ref)

    x = x_ref[...]
    h1 = jnp.dot(x, w1_ref[...], preferred_element_type=jnp.float32)
    xsum_ref[0:1, :] += jnp.sum(x, axis=0, keepdims=True)
    sq_ref[0:1, :] += jnp.sum(h1 * h1, axis=0, keepdims=True)


def _make_stats2_kernel(tile_b, n_per_core, batch, needs_mask):
    def kernel(x_ref, w1_ref, sc1_ref, sh1_ref, w2_ref, sum_ref, sq_ref):
        # Recompute h1 (cheaper than spilling it), apply folded BN1 + ReLU,
        # accumulate per-core partial sum / sumsq of h2 = a1 @ W2.
        @pl.when(pl.program_id(1) == 0)
        def _():
            sum_ref[...] = jnp.zeros_like(sum_ref)
            sq_ref[...] = jnp.zeros_like(sq_ref)

        h1 = jnp.dot(x_ref[...], w1_ref[...], preferred_element_type=jnp.float32)
        a1 = jnp.maximum(h1 * sc1_ref[...] + sh1_ref[...], 0.0)
        if needs_mask:
            # Zero-padded rows have h1 == 0 but relu(shift1) != 0, so mask them
            # out before they contaminate the BN2 statistics.
            start = (pl.program_id(0) * n_per_core + pl.program_id(1)) * tile_b
            rows = jax.lax.broadcasted_iota(jnp.int32, (tile_b, 1), 0) + start
            a1 = jnp.where(rows < batch, a1, 0.0)
        h2 = jnp.dot(a1, w2_ref[...], preferred_element_type=jnp.float32)
        sum_ref[0:1, :] += jnp.sum(h2, axis=0, keepdims=True)
        sq_ref[0:1, :] += jnp.sum(h2 * h2, axis=0, keepdims=True)
    return kernel


def _final_kernel(x_ref, w1_ref, sc1_ref, sh1_ref, w2_ref, sc2_ref, sh2_ref,
                  w3_ref, b3_ref, o_ref):
    h1 = jnp.dot(x_ref[...], w1_ref[...], preferred_element_type=jnp.float32)
    a1 = jnp.maximum(h1 * sc1_ref[...] + sh1_ref[...], 0.0)
    h2 = jnp.dot(a1, w2_ref[...], preferred_element_type=jnp.float32)
    a2 = jnp.maximum(h2 * sc2_ref[...] + sh2_ref[...], 0.0)
    # Keep the narrow O=3 output (masked stores): padding to 128 lanes would
    # add ~42x more output HBM bytes than the masked stores cost.
    o_ref[...] = (jnp.dot(a2, w3_ref[...], preferred_element_type=jnp.float32)
                  + b3_ref[...]).astype(o_ref.dtype)


def _fold_bn(s, ss, gamma, beta, batch):
    # Full-batch sum / sumsq -> folded scale/shift.  One-pass variance with a
    # clamp; for extremely ill-conditioned activations a shifted/Welford
    # combine would be more robust (not needed for this workload).
    mean = s / batch
    var = jnp.maximum(ss / batch - mean * mean, 0.0)
    scale = gamma * jax.lax.rsqrt(var + EPS)
    shift = beta - mean * scale
    return scale, shift


def _tiled_forward(x, p, tile_b, vmem_limit):
    B, F = x.shape
    w1, w2, w3, b3 = p["w1"], p["w2"], p["w3"], p["b3"]
    g1, be1, g2, be2 = p["g1"], p["be1"], p["g2"], p["be2"]
    H1, H2, O = w1.shape[1], w2.shape[1], w3.shape[1]

    # Zero-pad the batch so it divides evenly into _NC per-core chunks of
    # tile_b-row tiles.  BN statistics are corrected to the true B below.
    chunk = _NC * tile_b
    B_pad = ((B + chunk - 1) // chunk) * chunk
    x_in = jnp.pad(x, ((0, B_pad - B), (0, 0))) if B_pad != B else x
    n_tiles = B_pad // tile_b
    n_per_core = n_tiles // _NC
    needs_mask = B_pad != B

    cp_stats = pltpu.CompilerParams(
        dimension_semantics=("parallel", "arbitrary"),
        vmem_limit_bytes=vmem_limit)
    cp_final = pltpu.CompilerParams(
        dimension_semantics=("parallel",),
        vmem_limit_bytes=vmem_limit)

    x_stats = pl.BlockSpec((tile_b, F), lambda c, i: (c * n_per_core + i, 0))
    full2 = lambda s: pl.BlockSpec(s, lambda c, i: (0, 0))
    # Per-core partial-stats slot: (8, H) block (sublane-aligned); only row 0
    # is accumulated, rows 1..7 stay zero from the init.
    part = lambda h: pl.BlockSpec((8, h), lambda c, i: (c, 0))

    # Pass 1: per-core partial [sum(x); sumsq(h1)] over batch tiles.
    xsum_p, sq1_p = pl.pallas_call(
        _stats1_kernel,
        out_shape=(jax.ShapeDtypeStruct((_NC * 8, F), jnp.float32),
                   jax.ShapeDtypeStruct((_NC * 8, H1), jnp.float32)),
        grid=(_NC, n_per_core),
        in_specs=[x_stats, full2((F, H1))],
        out_specs=(part(F), part(H1)),
        compiler_params=cp_stats,
    )(x_in, w1)
    sum_h1 = jnp.sum(xsum_p, axis=0, keepdims=True) @ w1    # sum(x@W1)=sum(x)@W1
    sc1, sh1 = _fold_bn(sum_h1, jnp.sum(sq1_p, axis=0, keepdims=True),
                        g1, be1, B)

    # Pass 2: per-core partial [sum; sumsq] of h2 (needs folded BN1 params).
    sum2_p, sq2_p = pl.pallas_call(
        _make_stats2_kernel(tile_b, n_per_core, B, needs_mask),
        out_shape=(jax.ShapeDtypeStruct((_NC * 8, H2), jnp.float32),
                   jax.ShapeDtypeStruct((_NC * 8, H2), jnp.float32)),
        grid=(_NC, n_per_core),
        in_specs=[x_stats, full2((F, H1)), full2((1, H1)), full2((1, H1)),
                  full2((H1, H2))],
        out_specs=(part(H2), part(H2)),
        compiler_params=cp_stats,
    )(x_in, w1, sc1, sh1, w2)
    sc2, sh2 = _fold_bn(jnp.sum(sum2_p, axis=0, keepdims=True),
                        jnp.sum(sq2_p, axis=0, keepdims=True), g2, be2, B)

    # Pass 3: normalize + output matmul, batch axis fully parallel.
    x_fin = pl.BlockSpec((tile_b, F), lambda i: (i, 0))
    full1 = lambda s: pl.BlockSpec(s, lambda i: (0, 0))
    cost = pl.CostEstimate(
        flops=2 * B_pad * (F * H1 + H1 * H2 + H2 * O),
        transcendentals=0,
        bytes_accessed=4 * (B_pad * (F + O)
                            + int(w1.size) + int(w2.size) + int(w3.size)),
    )
    out = pl.pallas_call(
        _final_kernel,
        out_shape=jax.ShapeDtypeStruct((B_pad, O), jnp.float32),
        grid=(n_tiles,),
        in_specs=[x_fin, full1((F, H1)), full1((1, H1)), full1((1, H1)),
                  full1((H1, H2)), full1((1, H2)), full1((1, H2)),
                  full1((H2, O)), full1((1, O))],
        out_specs=pl.BlockSpec((tile_b, O), lambda i: (i, 0)),
        compiler_params=cp_final,
        cost_estimate=cost,
    )(x_in, w1, sc1, sh1, w2, sc2, sh2, w3, b3)
    return out[:B] if B_pad != B else out


# ---------------------------------------------------------------------------
# Dispatch wrapper.
# ---------------------------------------------------------------------------
def multi_output_nn(x, params, *, tile_b=None):
    """Forward pass of MultiOutputNN (training-mode BatchNorm1d semantics).

    x: [B, input_size] float32.  params: dict (see init_params).
    Small/mid batches (VMEM-aware threshold): one fused VMEM-resident kernel.
    Larger batches (or explicit tile_b): batch-tiled three-pass pipeline with
    exact full-batch BN statistics (ragged B handled via zero-padding + mask).
    """
    B, F = x.shape
    H1, H2 = params["w1"].shape[1], params["w2"].shape[1]
    O = params["w3"].shape[1]
    vlim = _vmem_limit()

    if tile_b is None:
        # Fused-kernel VMEM footprint estimate (lane-padded, ~live-copy count).
        wbytes = 4 * sum(int(params[k].size) for k in
                         ("w1", "g1", "be1", "w2", "g2", "be2", "w3", "b3"))
        per_row = 4 * (_pad128(F) + 3 * _pad128(H1) + 2 * _pad128(H2) + _pad128(O))
        if B * per_row + wbytes <= vlim // 2:
            return _fused_forward(x, params, vlim)
        default_tile = 8192 if vlim >= 64 * _MIB else 4096
        # Shrink the tile toward cdiv(B, _NC) to limit zero-padding waste for
        # batches just above the fused threshold.
        tile_b = min(default_tile, (((B + _NC - 1) // _NC) + 7) // 8 * 8)

    tile_b = max(8, ((int(tile_b) + 7) // 8) * 8)
    if tile_b >= B:
        return _fused_forward(x, params, vlim)
    # TODO(synk): optional v5e-only variant that spills h2 in pass 2 and skips
    # the fc1/fc2 recompute in pass 3 (pass 3 is mem-bound on v6e/v7x).
    return _tiled_forward(x, params, tile_b, vlim)


# ---------------------------------------------------------------------------
# Parameter init (matches the PyTorch module's shapes) + pure-JAX reference.
# ---------------------------------------------------------------------------
def init_params(key, input_size, output_size=3):
    """Linear weights stored transposed: [in_features, out_features].
    Biases / BN params stored as [1, features] (TPU-friendly 2-D layout)."""
    ks = jax.random.split(key, 6)

    def lin(kw, kb, fan_in, fan_out):
        bound = 1.0 / jnp.sqrt(fan_in)
        w = jax.random.uniform(kw, (fan_in, fan_out), jnp.float32, -bound, bound)
        b = jax.random.uniform(kb, (1, fan_out), jnp.float32, -bound, bound)
        return w, b

    w1, b1 = lin(ks[0], ks[1], input_size, 64)
    w2, b2 = lin(ks[2], ks[3], 64, 32)
    w3, b3 = lin(ks[4], ks[5], 32, output_size)
    return {
        "w1": w1, "b1": b1,
        "g1": jnp.ones((1, 64), jnp.float32), "be1": jnp.zeros((1, 64), jnp.float32),
        "w2": w2, "b2": b2,
        "g2": jnp.ones((1, 32), jnp.float32), "be2": jnp.zeros((1, 32), jnp.float32),
        "w3": w3, "b3": b3,
    }


def reference(x, p):
    """Pure-JAX reference of the PyTorch forward (training-mode BatchNorm1d).
    Uses the Linear biases explicitly — validates that dropping them in the
    kernels is exactly equivalent."""
    def bn_relu(h, g, be):
        m = jnp.mean(h, axis=0, keepdims=True)
        v = jnp.mean((h - m) ** 2, axis=0, keepdims=True)
        return jnp.maximum((h - m) / jnp.sqrt(v + EPS) * g + be, 0.0)

    h = x @ p["w1"] + p["b1"]
    h = bn_relu(h, p["g1"], p["be1"])
    h = h @ p["w2"] + p["b2"]
    h = bn_relu(h, p["g2"], p["be2"])
    return h @ p["w3"] + p["b3"]


if __name__ == "__main__":
    key = jax.random.PRNGKey(0)
    k1, k2, k3, kp = jax.random.split(key, 4)

    input_size, output_size = 32, 3
    params = init_params(kp, input_size, output_size)

    # 1) Small batch -> fully fused single-block kernel.
    x_small = jax.random.normal(k1, (8, input_size), dtype=jnp.float32)
    out_small = jax.block_until_ready(multi_output_nn(x_small, params))
    assert out_small.shape == (8, output_size)
    assert jnp.allclose(out_small, reference(x_small, params),
                        atol=1e-4, rtol=1e-4), "fused kernel mismatch"

    # 2) Batch-tiled three-pass path (forced via explicit tile_b), exact tiles.
    x_mid = jax.random.normal(k2, (512, input_size), dtype=jnp.float32)
    out_mid = jax.block_until_ready(multi_output_nn(x_mid, params, tile_b=128))
    assert out_mid.shape == (512, output_size)
    assert jnp.allclose(out_mid, reference(x_mid, params),
                        atol=5e-4, rtol=5e-4), "tiled kernel mismatch"

    # 3) Ragged batch -> zero-padded tiles + masked BN2 statistics.
    x_rag = jax.random.normal(k3, (300, input_size), dtype=jnp.float32)
    out_rag = jax.block_until_ready(multi_output_nn(x_rag, params, tile_b=128))
    assert out_rag.shape == (300, output_size)
    assert jnp.allclose(out_rag, reference(x_rag, params),
                        atol=5e-4, rtol=5e-4), "ragged/padded kernel mismatch"

    print("KERNEL_OK")
</pallas_src>

<mosaic_0001>
module attributes {stable_mosaic.version = 11 : i64} {
  func.func @_fused_kernel(%arg0: memref<8x32xf32, #tpu.memory_space<vmem>>, %arg1: memref<32x64xf32, #tpu.memory_space<vmem>>, %arg2: memref<1x64xf32, #tpu.memory_space<vmem>>, %arg3: memref<1x64xf32, #tpu.memory_space<vmem>>, %arg4: memref<64x32xf32, #tpu.memory_space<vmem>>, %arg5: memref<1x32xf32, #tpu.memory_space<vmem>>, %arg6: memref<1x32xf32, #tpu.memory_space<vmem>>, %arg7: memref<32x3xf32, #tpu.memory_space<vmem>>, %arg8: memref<1x3xf32, #tpu.memory_space<vmem>>, %arg9: memref<8x3xf32, #tpu.memory_space<vmem>>) attributes {dimension_semantics = [], scalar_prefetch = 0 : i64, scratch_operands = 0 : i64, tpu.core_type = #tpu.core_type<tc>} {
    %c0 = arith.constant 0 : index
    %c0_0 = arith.constant 0 : index
    %0 = vector.load %arg0[%c0, %c0_0] : memref<8x32xf32, #tpu.memory_space<vmem>>, vector<8x32xf32>
    %c0_1 = arith.constant 0 : index
    %c0_2 = arith.constant 0 : index
    %1 = vector.load %arg1[%c0_1, %c0_2] : memref<32x64xf32, #tpu.memory_space<vmem>>, vector<32x64xf32>
    %cst = arith.constant dense<0.000000e+00> : vector<8x64xf32>
    %2 = tpu.matmul %0, %1, %cst {dimension_numbers = #tpu.dot_dimension_numbers<[1], [0], [0], [1], [0, 0, 1, 1], [], []>} : vector<8x32xf32>, vector<32x64xf32>, vector<8x64xf32> -> vector<8x64xf32>
    %c0_3 = arith.constant 0 : index
    %c0_4 = arith.constant 0 : index
    %3 = vector.load %arg2[%c0_3, %c0_4] : memref<1x64xf32, #tpu.memory_space<vmem>>, vector<1x64xf32>
    %c0_5 = arith.constant 0 : index
    %c0_6 = arith.constant 0 : index
    %4 = vector.load %arg3[%c0_5, %c0_6] : memref<1x64xf32, #tpu.memory_space<vmem>>, vector<1x64xf32>
    %cst_7 = arith.constant dense<0.000000e+00> : vector<64xf32>
    %5 = vector.multi_reduction <add>, %2, %cst_7 [0] : vector<8x64xf32> to vector<64xf32>
    %6 = vector.shape_cast %5 : vector<64xf32> to vector<1x64xf32>
    %cst_8 = arith.constant 1.250000e-01 : f32
    %7 = vector.broadcast %cst_8 : f32 to vector<1x64xf32>
    %8 = arith.mulf %6, %7 : vector<1x64xf32>
    %9 = vector.broadcast %8 : vector<1x64xf32> to vector<8x64xf32>
    %10 = arith.subf %2, %9 : vector<8x64xf32>
    %11 = arith.mulf %10, %10 : vector<8x64xf32>
    %cst_9 = arith.constant dense<0.000000e+00> : vector<64xf32>
    %12 = vector.multi_reduction <add>, %11, %cst_9 [0] : vector<8x64xf32> to vector<64xf32>
    %13 = vector.shape_cast %12 : vector<64xf32> to vector<1x64xf32>
    %cst_10 = arith.constant 1.250000e-01 : f32
    %14 = vector.broadcast %cst_10 : f32 to vector<1x64xf32>
    %15 = arith.mulf %13, %14 : vector<1x64xf32>
    %cst_11 = arith.constant 9.99999974E-6 : f32
    %16 = vector.broadcast %cst_11 : f32 to vector<1x64xf32>
    %17 = arith.addf %15, %16 : vector<1x64xf32>
    %18 = math.rsqrt %17 : vector<1x64xf32>
    %19 = arith.mulf %3, %18 : vector<1x64xf32>
    %20 = vector.broadcast %19 : vector<1x64xf32> to vector<8x64xf32>
    %21 = arith.mulf %10, %20 : vector<8x64xf32>
    %22 = vector.broadcast %4 : vector<1x64xf32> to vector<8x64xf32>
    %23 = arith.addf %21, %22 : vector<8x64xf32>
    %cst_12 = arith.constant 0.000000e+00 : f32
    %24 = vector.broadcast %cst_12 : f32 to vector<8x64xf32>
    %25 = arith.maximumf %23, %24 : vector<8x64xf32>
    %c0_13 = arith.constant 0 : index
    %c0_14 = arith.constant 0 : index
    %26 = vector.load %arg4[%c0_13, %c0_14] : memref<64x32xf32, #tpu.memory_space<vmem>>, vector<64x32xf32>
    %cst_15 = arith.constant dense<0.000000e+00> : vector<8x32xf32>
    %27 = tpu.matmul %25, %26, %cst_15 {dimension_numbers = #tpu.dot_dimension_numbers<[1], [0], [0], [1], [0, 0, 1, 1], [], []>} : vector<8x64xf32>, vector<64x32xf32>, vector<8x32xf32> -> vector<8x32xf32>
    %c0_16 = arith.constant 0 : index
    %c0_17 = arith.constant 0 : index
    %28 = vector.load %arg5[%c0_16, %c0_17] : memref<1x32xf32, #tpu.memory_space<vmem>>, vector<1x32xf32>
    %c0_18 = arith.constant 0 : index
    %c0_19 = arith.constant 0 : index
    %29 = vector.load %arg6[%c0_18, %c0_19] : memref<1x32xf32, #tpu.memory_space<vmem>>, vector<1x32xf32>
    %cst_20 = arith.constant dense<0.000000e+00> : vector<32xf32>
    %30 = vector.multi_reduction <add>, %27, %cst_20 [0] : vector<8x32xf32> to vector<32xf32>
    %31 = vector.shape_cast %30 : vector<32xf32> to vector<1x32xf32>
    %cst_21 = arith.constant 1.250000e-01 : f32
    %32 = vector.broadcast %cst_21 : f32 to vector<1x32xf32>
    %33 = arith.mulf %31, %32 : vector<1x32xf32>
    %34 = vector.broadcast %33 : vector<1x32xf32> to vector<8x32xf32>
    %35 = arith.subf %27, %34 : vector<8x32xf32>
    %36 = arith.mulf %35, %35 : vector<8x32xf32>
    %cst_22 = arith.constant dense<0.000000e+00> : vector<32xf32>
    %37 = vector.multi_reduction <add>, %36, %cst_22 [0] : vector<8x32xf32> to vector<32xf32>
    %38 = vector.shape_cast %37 : vector<32xf32> to vector<1x32xf32>
    %cst_23 = arith.constant 1.250000e-01 : f32
    %39 = vector.broadcast %cst_23 : f32 to vector<1x32xf32>
    %40 = arith.mulf %38, %39 : vector<1x32xf32>
    %cst_24 = arith.constant 9.99999974E-6 : f32
    %41 = vector.broadcast %cst_24 : f32 to vector<1x32xf32>
    %42 = arith.addf %40, %41 : vector<1x32xf32>
    %43 = math.rsqrt %42 : vector<1x32xf32>
    %44 = arith.mulf %28, %43 : vector<1x32xf32>
    %45 = vector.broadcast %44 : vector<1x32xf32> to vector<8x32xf32>
    %46 = arith.mulf %35, %45 : vector<8x32xf32>
    %47 = vector.broadcast %29 : vector<1x32xf32> to vector<8x32xf32>
    %48 = arith.addf %46, %47 : vector<8x32xf32>
    %cst_25 = arith.constant 0.000000e+00 : f32
    %49 = vector.broadcast %cst_25 : f32 to vector<8x32xf32>
    %50 = arith.maximumf %48, %49 : vector<8x32xf32>
    %c0_26 = arith.constant 0 : index
    %c0_27 = arith.constant 0 : index
    %51 = vector.load %arg7[%c0_26, %c0_27] : memref<32x3xf32, #tpu.memory_space<vmem>>, vector<32x3xf32>
    %cst_28 = arith.constant dense<0.000000e+00> : vector<8x3xf32>
    %52 = tpu.matmul %50, %51, %cst_28 {dimension_numbers = #tpu.dot_dimension_numbers<[1], [0], [0], [1], [0, 0, 1, 1], [], []>} : vector<8x32xf32>, vector<32x3xf32>, vector<8x3xf32> -> vector<8x3xf32>
    %c0_29 = arith.constant 0 : index
    %c0_30 = arith.constant 0 : index
    %53 = vector.load %arg8[%c0_29, %c0_30] : memref<1x3xf32, #tpu.memory_space<vmem>>, vector<1x3xf32>
    %54 = vector.broadcast %53 : vector<1x3xf32> to vector<8x3xf32>
    %55 = arith.addf %52, %54 : vector<8x3xf32>
    %c0_31 = arith.constant 0 : index
    %c0_32 = arith.constant 0 : index
    %56 = vector.load %arg9[%c0_31, %c0_32] : memref<8x3xf32, #tpu.memory_space<vmem>>, vector<8x3xf32>
    tpu.vector_store %arg9[%c0_31, %c0_32], %55 {strides = array<i32>} : memref<8x3xf32, #tpu.memory_space<vmem>>, vector<8x3xf32>,
    return
  }
}

</mosaic_0001>

<llo_original>
// kernel: tpu_custom_call.1
$region0: #{tpu_custom_call.1}
  #allocation0 [shape = 'u32[]', space=smem, size = 0x4, offset = 0x4, fixed_abs, tag = 'smem constant byte address 0x4 - core index']
  #allocation1 [shape = 'u32[144,128]{1,0:T(1,128)}', space=vmem, size = 0x12000, scoped, tag = 'internal scratch']
  %s0 = inlined_call_operand.vmem [shape: f32[8,32], index: 0, kind: input, shape index: {}]
  %s1 = inlined_call_operand.vmem [shape: f32[32,64], index: 1, kind: input, shape index: {}]
  %s2 = inlined_call_operand.vmem [shape: f32[1,64], index: 2, kind: input, shape index: {}]
  %s3 = inlined_call_operand.vmem [shape: f32[1,64], index: 3, kind: input, shape index: {}]
  %s4 = inlined_call_operand.vmem [shape: f32[64,32], index: 4, kind: input, shape index: {}]
  %s5 = inlined_call_operand.vmem [shape: f32[1,32], index: 5, kind: input, shape index: {}]
  %s6 = inlined_call_operand.vmem [shape: f32[1,32], index: 6, kind: input, shape index: {}]
  %s7 = inlined_call_operand.vmem [shape: f32[32,3], index: 7, kind: input, shape index: {}]
  %s8 = inlined_call_operand.vmem [shape: f32[1,3], index: 8, kind: input, shape index: {}]
  %s9 = inlined_call_operand.vmem [shape: f32[8,3], index: 9, kind: output, shape index: {}]
  %s10 = sld [smem:[#allocation0]]
  $region46: #{tpu_custom_call.1} parent=0
    _
  %s12 = ssub.s32 1, %s10
  %s13 = scalar_select 0, %s12, %s10
  // Predicated region
  $region2: #{tpu_custom_call.1} parent=0 // pred_check
    _
  $region3: #{tpu_custom_call.1} parent=0 // pred_check_branch
    %15 = sbr.rel (0) target = $region5
  $region4: #{tpu_custom_call.1} parent=0 // pred_region
    _
  $region5: #{tpu_custom_call.1} parent=0 // pred_fallthru
    _
  // Predicated region
  $region6: #{tpu_custom_call.1} parent=0 // pred_check
    _
  $region7: #{tpu_custom_call.1} parent=0 // pred_check_branch
    %17 = sbr.rel (0) target = $region9
  $region8: #{tpu_custom_call.1} parent=0 // pred_region
    _
  $region9: #{tpu_custom_call.1} parent=0 // pred_fallthru
    _
  // Predicated region
  $region10: #{tpu_custom_call.1} parent=0 // pred_check
    _
  $region11: #{tpu_custom_call.1} parent=0 // pred_check_branch
    %19 = sbr.rel (0) target = $region13
  $region12: #{tpu_custom_call.1} parent=0 // pred_region
    _
  $region13: #{tpu_custom_call.1} parent=0 // pred_fallthru
    _
  // Predicated region
  $region14: #{tpu_custom_call.1} parent=0 // pred_check
    _
  $region15: #{tpu_custom_call.1} parent=0 // pred_check_branch
    %21 = sbr.rel (0) target = $region17
  $region16: #{tpu_custom_call.1} parent=0 // pred_region
    _
  $region17: #{tpu_custom_call.1} parent=0 // pred_fallthru
    _
  // Predicated region
  $region18: #{tpu_custom_call.1} parent=0 // pred_check
    _
  $region19: #{tpu_custom_call.1} parent=0 // pred_check_branch
    %23 = sbr.rel (0) target = $region21
  $region20: #{tpu_custom_call.1} parent=0 // pred_region
    _
  $region21: #{tpu_custom_call.1} parent=0 // pred_fallthru
    _
  // Predicated region
  $region22: #{tpu_custom_call.1} parent=0 // pred_check
    _
  $region23: #{tpu_custom_call.1} parent=0 // pred_check_branch
    %25 = sbr.rel (0) target = $region25
  $region24: #{tpu_custom_call.1} parent=0 // pred_region
    _
  $region25: #{tpu_custom_call.1} parent=0 // pred_fallthru
    _
  // Predicated region
  $region26: #{tpu_custom_call.1} parent=0 // pred_check
    _
  $region27: #{tpu_custom_call.1} parent=0 // pred_check_branch
    %27 = sbr.rel (0) target = $region29
  $region28: #{tpu_custom_call.1} parent=0 // pred_region
    _
  $region29: #{tpu_custom_call.1} parent=0 // pred_fallthru
    _
  // Predicated region
  $region30: #{tpu_custom_call.1} parent=0 // pred_check
    _
  $region31: #{tpu_custom_call.1} parent=0 // pred_check_branch
    %29 = sbr.rel (0) target = $region33
  $region32: #{tpu_custom_call.1} parent=0 // pred_region
    _
  $region33: #{tpu_custom_call.1} parent=0 // pred_fallthru
    _
  // Predicated region
  $region34: #{tpu_custom_call.1} parent=0 // pred_check
    _
  $region35: #{tpu_custom_call.1} parent=0 // pred_check_branch
    %31 = sbr.rel (0) target = $region37
  $region36: #{tpu_custom_call.1} parent=0 // pred_region
    _
  $region37: #{tpu_custom_call.1} parent=0 // pred_fallthru
    _
  %v32 = vld [vmem:[%s0] sm:$0xff]
  %v33 = vld [vmem:[%s1] sm:$0xff]
  %v34 = vld [vmem:[%s1 + $0x8] sm:$0xff]
  %v35 = vld [vmem:[%s1 + $0x10] sm:$0xff]
  %v36 = vld [vmem:[%s1 + $0x18] sm:$0xff]
  %vm37 = vcmask 261120
  %v39 = vsel %vm37, %v32, 0
  %41 = vmatprep.subr.mxu0 0.0
  %42 = vmatpush1.msra.mxu0 %v33
  %43 = vmatprep.subr.mxu0 0.0
  %44 = vmatpush1.msra.mxu0 %v34
  %45 = vmatprep.subr.mxu0 0.0
  %46 = vmatpush1.msra.mxu0 %v35
  %47 = vmatprep.subr.mxu0 0.0
  %48 = vmatpush1.msra.mxu0 %v36
  %49 = vmatprep.subr.mxu0 0.0
  %50 = vmatpush1.msra.mxu0 0.0
  %51 = vmatprep.subr.mxu0 0.0
  %52 = vmatpush1.msra.mxu0 0.0
  %53 = vmatprep.subr.mxu0 0.0
  %54 = vmatpush1.msra.mxu0 0.0
  %55 = vmatprep.subr.mxu0 0.0
  %56 = vmatpush1.msra.mxu0 0.0
  %57 = vmatprep.subr.mxu0 0.0
  %58 = vmatpush1.msra.mxu0 0.0
  %59 = vmatprep.subr.mxu0 0.0
  %60 = vmatpush1.msra.mxu0 0.0
  %61 = vmatprep.subr.mxu0 0.0
  %62 = vmatpush1.msra.mxu0 0.0
  %63 = vmatprep.subr.mxu0 0.0
  %64 = vmatpush1.msra.mxu0 0.0
  %65 = vmatprep.subr.mxu0 0.0
  %66 = vmatpush1.msra.mxu0 0.0
  %67 = vmatprep.subr.mxu0 0.0
  %68 = vmatpush1.msra.mxu0 0.0
  %69 = vmatprep.subr.mxu0 0.0
  %70 = vmatpush1.msra.mxu0 0.0
  %71 = vmatprep.subr.mxu0 0.0
  %72 = vmatpush1.msra.mxu0 0.0
  %73 = vmatprep.subr.mxu0 0.0
  %74 = vmatpush1.msra.mxu0 0.0
  %75 = vmatprep.subr.mxu0 0.0
  %76 = vmatpush1.msra.mxu0 0.0
  %77 = vmatprep.subr.mxu0 0.0
  %78 = vmatpush1.msra.mxu0 0.0
  %79 = vmatprep.subr.mxu0 0.0
  %80 = vmatpush1.msra.mxu0 0.0
  %81 = vmatprep.subr.mxu0 0.0
  %82 = vmatpush1.msra.mxu0 0.0
  %83 = vmatprep.subr.mxu0 0.0
  %84 = vmatpush1.msra.mxu0 0.0
  %85 = vmatprep.subr.mxu0 0.0
  %86 = vmatpush1.msra.mxu0 0.0
  %87 = vmatprep.subr.mxu0 0.0
  %88 = vmatpush1.msra.mxu0 0.0
  %89 = vmatprep.subr.mxu0 0.0
  %90 = vmatpush1.msra.mxu0 0.0
  %91 = vmatprep.subr.mxu0 0.0
  %92 = vmatpush1.msra.mxu0 0.0
  %93 = vmatprep.subr.mxu0 0.0
  %94 = vmatpush1.msra.mxu0 0.0
  %95 = vmatprep.subr.mxu0 0.0
  %96 = vmatpush1.msra.mxu0 0.0
  %97 = vmatprep.subr.mxu0 0.0
  %98 = vmatpush1.msra.mxu0 0.0
  %99 = vmatprep.subr.mxu0 0.0
  %100 = vmatpush1.msra.mxu0 0.0
  %101 = vmatprep.subr.mxu0 0.0
  %102 = vmatpush1.msra.mxu0 0.0
  %103 = vmatprep.subr.mxu0 0.0
  %104 = vmatpush1.msra.mxu0 0.0
  %105 = vmatprep.mubr.f32.mxu0 0.0
  %106 = vmatmul.mubr.f32.gmra.mrb[0].mxu0 %v39
  %v107 = vpop.f32.mrb[0].mxu0
  %v108 = vadd.f32 0.0, %v107
  %v109 = vpop.f32.mrb[0].mxu0
  %110 = vdwg.mxu0
  %v111 = vld [vmem:[%s2] sm:$0x1]
  %v112 = vld [vmem:[%s3] sm:$0x1]
  %vm113 = vcmask 523264
  %v114 = vsel %vm113, %v108, 0.0
  %v115 = vrot.slane %v114, 4
  %v116 = vadd.f32 %v114, %v115
  %v117 = vrot.slane %v116, 2
  %v118 = vadd.f32 %v116, %v117
  %v119 = vrot.slane %v118, 1
  %v120 = vadd.f32 %v118, %v119
  %v121 = vmul.f32 %v120, 0.125
  %v122 = vsub.f32 %v108, %v121
  %v123 = vmul.f32 %v122, %v122
  %v124 = vsel %vm113, %v123, 0.0
  %v125 = vrot.slane %v124, 4
  %v126 = vadd.f32 %v124, %v125
  %v127 = vrot.slane %v126, 2
  %v128 = vadd.f32 %v126, %v127
  %v129 = vrot.slane %v128, 1
  %v130 = vadd.f32 %v128, %v129
  %v131 = vmul.f32 %v130, 0.125
  %v132 = vadd.f32 %v131, 1e-05
  %v133 = vrsqrt.pop %v132
  %v134 = vmul.f32 %v111, %v133
  %v136 = vlaneseq
  %v137 = vshrl.u32 %v136, 7
  %v138 = vsub.s32 0, %v137
  %v139 = vrot.slane %v134, %v138
  %v141 = vmul.f32 %v122, %v139
  %v143 = vlaneseq
  %v144 = vshrl.u32 %v143, 7
  %v145 = vsub.s32 0, %v144
  %v146 = vrot.slane %v112, %v145
  %v148 = vadd.f32 %v141, %v146
  %v149 = vmax.f32 %v148, 0.0
  %v150 = vld [vmem:[%s4] sm:$0xff]
  %v151 = vld [vmem:[%s4 + $0x8] sm:$0xff]
  %v152 = vld [vmem:[%s4 + $0x10] sm:$0xff]
  %v153 = vld [vmem:[%s4 + $0x18] sm:$0xff]
  %v154 = vld [vmem:[%s4 + $0x20] sm:$0xff]
  %v155 = vld [vmem:[%s4 + $0x28] sm:$0xff]
  %v156 = vld [vmem:[%s4 + $0x30] sm:$0xff]
  %v157 = vld [vmem:[%s4 + $0x38] sm:$0xff]
  %v159 = vsel %vm113, %v149, 0
  %161 = vmatprep.subr.mxu0 0.0
  %162 = vmatpush1.msra.mxu0 %v150
  %163 = vmatprep.subr.mxu0 0.0
  %164 = vmatpush1.msra.mxu0 %v151
  %165 = vmatprep.subr.mxu0 0.0
  %166 = vmatpush1.msra.mxu0 %v152
  %167 = vmatprep.subr.mxu0 0.0
  %168 = vmatpush1.msra.mxu0 %v153
  %169 = vmatprep.subr.mxu0 0.0
  %170 = vmatpush1.msra.mxu0 %v154
  %171 = vmatprep.subr.mxu0 0.0
  %172 = vmatpush1.msra.mxu0 %v155
  %173 = vmatprep.subr.mxu0 0.0
  %174 = vmatpush1.msra.mxu0 %v156
  %175 = vmatprep.subr.mxu0 0.0
  %176 = vmatpush1.msra.mxu0 %v157
  %177 = vmatprep.subr.mxu0 0.0
  %178 = vmatpush1.msra.mxu0 0.0
  %179 = vmatprep.subr.mxu0 0.0
  %180 = vmatpush1.msra.mxu0 0.0
  %181 = vmatprep.subr.mxu0 0.0
  %182 = vmatpush1.msra.mxu0 0.0
  %183 = vmatprep.subr.mxu0 0.0
  %184 = vmatpush1.msra.mxu0 0.0
  %185 = vmatprep.subr.mxu0 0.0
  %186 = vmatpush1.msra.mxu0 0.0
  %187 = vmatprep.subr.mxu0 0.0
  %188 = vmatpush1.msra.mxu0 0.0
  %189 = vmatprep.subr.mxu0 0.0
  %190 = vmatpush1.msra.mxu0 0.0
  %191 = vmatprep.subr.mxu0 0.0
  %192 = vmatpush1.msra.mxu0 0.0
  %193 = vmatprep.subr.mxu0 0.0
  %194 = vmatpush1.msra.mxu0 0.0
  %195 = vmatprep.subr.mxu0 0.0
  %196 = vmatpush1.msra.mxu0 0.0
  %197 = vmatprep.subr.mxu0 0.0
  %198 = vmatpush1.msra.mxu0 0.0
  %199 = vmatprep.subr.mxu0 0.0
  %200 = vmatpush1.msra.mxu0 0.0
  %201 = vmatprep.subr.mxu0 0.0
  %202 = vmatpush1.msra.mxu0 0.0
  %203 = vmatprep.subr.mxu0 0.0
  %204 = vmatpush1.msra.mxu0 0.0
  %205 = vmatprep.subr.mxu0 0.0
  %206 = vmatpush1.msra.mxu0 0.0
  %207 = vmatprep.subr.mxu0 0.0
  %208 = vmatpush1.msra.mxu0 0.0
  %209 = vmatprep.subr.mxu0 0.0
  %210 = vmatpush1.msra.mxu0 0.0
  %211 = vmatprep.subr.mxu0 0.0
  %212 = vmatpush1.msra.mxu0 0.0
  %213 = vmatprep.subr.mxu0 0.0
  %214 = vmatpush1.msra.mxu0 0.0
  %215 = vmatprep.subr.mxu0 0.0
  %216 = vmatpush1.msra.mxu0 0.0
  %217 = vmatprep.subr.mxu0 0.0
  %218 = vmatpush1.msra.mxu0 0.0
  %219 = vmatprep.subr.mxu0 0.0
  %220 = vmatpush1.msra.mxu0 0.0
  %221 = vmatprep.subr.mxu0 0.0
  %222 = vmatpush1.msra.mxu0 0.0
  %223 = vmatprep.subr.mxu0 0.0
  %224 = vmatpush1.msra.mxu0 0.0
  %225 = vmatprep.mubr.f32.mxu0 0.0
  %226 = vmatmul.mubr.f32.gmra.mrb[0].mxu0 %v159
  %v227 = vpop.f32.mrb[0].mxu0
  %v228 = vadd.f32 0.0, %v227
  %v229 = vpop.f32.mrb[0].mxu0
  %230 = vdwg.mxu0
  %v231 = vld [vmem:[%s5] sm:$0x1]
  %v232 = vld [vmem:[%s6] sm:$0x1]
  %v233 = vsel %vm37, %v228, 0.0
  %v234 = vrot.slane %v233, 4
  %v235 = vadd.f32 %v233, %v234
  %v236 = vrot.slane %v235, 2
  %v237 = vadd.f32 %v235, %v236
  %v238 = vrot.slane %v237, 1
  %v239 = vadd.f32 %v237, %v238
  %v240 = vmul.f32 %v239, 0.125
  %v241 = vsub.f32 %v228, %v240
  %v242 = vmul.f32 %v241, %v241
  %v243 = vsel %vm37, %v242, 0.0
  %v244 = vrot.slane %v243, 4
  %v245 = vadd.f32 %v243, %v244
  %v246 = vrot.slane %v245, 2
  %v247 = vadd.f32 %v245, %v246
  %v248 = vrot.slane %v247, 1
  %v249 = vadd.f32 %v247, %v248
  %v250 = vmul.f32 %v249, 0.125
  %v251 = vadd.f32 %v250, 1e-05
  %v252 = vrsqrt.pop %v251
  %v253 = vmul.f32 %v231, %v252
  %v255 = vlaneseq
  %v256 = vshrl.u32 %v255, 7
  %v257 = vsub.s32 0, %v256
  %v258 = vrot.slane %v253, %v257
  %v260 = vmul.f32 %v241, %v258
  %v262 = vlaneseq
  %v263 = vshrl.u32 %v262, 7
  %v264 = vsub.s32 0, %v263
  %v265 = vrot.slane %v232, %v264
  %v267 = vadd.f32 %v260, %v265
  %v268 = vmax.f32 %v267, 0.0
  %v269 = vld [vmem:[%s7] sm:$0xff]
  %v270 = vld [vmem:[%s7 + $0x8] sm:$0xff]
  %v271 = vld [vmem:[%s7 + $0x10] sm:$0xff]
  %v272 = vld [vmem:[%s7 + $0x18] sm:$0xff]
  %v273 = vld [vmem:[%s8] sm:$0x1]
  %v275 = vlaneseq
  %v276 = vshrl.u32 %v275, 7
  %v277 = vsub.s32 0, %v276
  %v278 = vrot.slane %v273, %v277
  %v281 = vsel %vm37, %v268, 0
  %283 = vmatprep.subr.mxu0 0.0
  %284 = vmatpush1.msra.mxu0 %v269
  %285 = vmatprep.subr.mxu0 0.0
  %286 = vmatpush1.msra.mxu0 %v270
  %287 = vmatprep.subr.mxu0 0.0
  %288 = vmatpush1.msra.mxu0 %v271
  %289 = vmatprep.subr.mxu0 0.0
  %290 = vmatpush1.msra.mxu0 %v272
  %291 = vmatprep.subr.mxu0 0.0
  %292 = vmatpush1.msra.mxu0 0.0
  %293 = vmatprep.subr.mxu0 0.0
  %294 = vmatpush1.msra.mxu0 0.0
  %295 = vmatprep.subr.mxu0 0.0
  %296 = vmatpush1.msra.mxu0 0.0
  %297 = vmatprep.subr.mxu0 0.0
  %298 = vmatpush1.msra.mxu0 0.0
  %299 = vmatprep.subr.mxu0 0.0
  %300 = vmatpush1.msra.mxu0 0.0
  %301 = vmatprep.subr.mxu0 0.0
  %302 = vmatpush1.msra.mxu0 0.0
  %303 = vmatprep.subr.mxu0 0.0
  %304 = vmatpush1.msra.mxu0 0.0
  %305 = vmatprep.subr.mxu0 0.0
  %306 = vmatpush1.msra.mxu0 0.0
  %307 = vmatprep.subr.mxu0 0.0
  %308 = vmatpush1.msra.mxu0 0.0
  %309 = vmatprep.subr.mxu0 0.0
  %310 = vmatpush1.msra.mxu0 0.0
  %311 = vmatprep.subr.mxu0 0.0
  %312 = vmatpush1.msra.mxu0 0.0
  %313 = vmatprep.subr.mxu0 0.0
  %314 = vmatpush1.msra.mxu0 0.0
  %315 = vmatprep.subr.mxu0 0.0
  %316 = vmatpush1.msra.mxu0 0.0
  %317 = vmatprep.subr.mxu0 0.0
  %318 = vmatpush1.msra.mxu0 0.0
  %319 = vmatprep.subr.mxu0 0.0
  %320 = vmatpush1.msra.mxu0 0.0
  %321 = vmatprep.subr.mxu0 0.0
  %322 = vmatpush1.msra.mxu0 0.0
  %323 = vmatprep.subr.mxu0 0.0
  %324 = vmatpush1.msra.mxu0 0.0
  %325 = vmatprep.subr.mxu0 0.0
  %326 = vmatpush1.msra.mxu0 0.0
  %327 = vmatprep.subr.mxu0 0.0
  %328 = vmatpush1.msra.mxu0 0.0
  %329 = vmatprep.subr.mxu0 0.0
  %330 = vmatpush1.msra.mxu0 0.0
  %331 = vmatprep.subr.mxu0 0.0
  %332 = vmatpush1.msra.mxu0 0.0
  %333 = vmatprep.subr.mxu0 0.0
  %334 = vmatpush1.msra.mxu0 0.0
  %335 = vmatprep.subr.mxu0 0.0
  %336 = vmatpush1.msra.mxu0 0.0
  %337 = vmatprep.subr.mxu0 0.0
  %338 = vmatpush1.msra.mxu0 0.0
  %339 = vmatprep.subr.mxu0 0.0
  %340 = vmatpush1.msra.mxu0 0.0
  %341 = vmatprep.subr.mxu0 0.0
  %342 = vmatpush1.msra.mxu0 0.0
  %343 = vmatprep.subr.mxu0 0.0
  %344 = vmatpush1.msra.mxu0 0.0
  %345 = vmatprep.subr.mxu0 0.0
  %346 = vmatpush1.msra.mxu0 0.0
  %347 = vmatprep.mubr.f32.mxu0 0.0
  %348 = vmatmul.mubr.f32.gmra.mrb[0].mxu0 %v281
  %v349 = vpop.f32.mrb[0].mxu0
  %v350 = vadd.f32 %v278, %v349
  %v351 = vpop.f32.mrb[0].mxu0
  %352 = vdwg.mxu0
  %vm353 = vcmask 23552
  %354 = vst.msk [vmem:[%s9] sm:$0xff] %vm353, %v350
  // Predicated region
  $region38: #{tpu_custom_call.1} parent=0 // pred_check
    _
  $region39: #{tpu_custom_call.1} parent=0 // pred_check_branch
    %356 = sbr.rel (0) target = $region41
  $region40: #{tpu_custom_call.1} parent=0 // pred_region
    _
  $region41: #{tpu_custom_call.1} parent=0 // pred_fallthru
    _
  // Predicated region
  $region42: #{tpu_custom_call.1} parent=0 // pred_check
    _
  $region43: #{tpu_custom_call.1} parent=0 // pred_check_branch
    %358 = sbr.rel (0) target = $region45
  $region44: #{tpu_custom_call.1} parent=0 // pred_region
    _
  $region45: #{tpu_custom_call.1} parent=0 // pred_fallthru
    _

</llo_original>
